<compile_context>
chip_gen: v7x
topology: tpu7x:2x2x1
jax: 0.10.0
libtpu: 0.0.40
codegen_flags: <defaults>
</compile_context>

<pallas_src>
import functools

import jax
import jax.numpy as jnp
from jax.experimental import pallas as pl
from jax.experimental.pallas import tpu as pltpu


# ---------------- Pallas kernel ----------------

def mlp_kernel(x_ref, w1_ref, wb_ref, fb_ref, o_ref, *, elem_dtype):
    # x_ref : (TB, 55)  f32, natural HBM layout (no wrapper transpose/cast).
    # w1_ref: (55, 128) f32 (fc1 weight, pre-transposed once at pack time).
    # wb_ref: (104, 128) bf16 blob: w2 [0:64,0:128], w3 [64:96,0:64], w4 [96:104,0:32].
    # fb_ref: (241, 1) f32 blob: b1,b2,b3,b4,w5,b5 stacked as a column.
    # o_ref : (1, TB) f32 — lane-dense output row.

    # fc1 in batch-major f32 (K=55 is tiny; accuracy-critical layer stays f32).
    x = x_ref[...]                                                   # (TB, 55)
    h_bm = jnp.dot(x, w1_ref[...], preferred_element_type=jnp.float32)  # (TB,128)

    # Switch to feature-major (features on sublanes, batch on lanes): the
    # (TB,128)->(128,TB) f32 transpose is the well-aligned shape and runs on
    # the otherwise-idle XLU; everything downstream is then lane-dense.
    h = h_bm.T                                                       # (128, TB) f32

    b1 = fb_ref[0:128]        # (128,1)
    b2 = fb_ref[128:192]      # (64,1)
    b3 = fb_ref[192:224]      # (32,1)
    b4 = fb_ref[224:232]      # (8,1)
    w5 = fb_ref[232:240]      # (8,1)
    b5 = fb_ref[240:241]      # (1,1)

    def bias_relu(acc_f32, b_col, out_dtype):
        t = acc_f32.astype(elem_dtype) + b_col.astype(elem_dtype)
        return jnp.maximum(t, 0).astype(out_dtype)

    h = bias_relu(h, b1, jnp.bfloat16)                               # (128, TB)

    # fc2 : (64,128) @ (128,TB) — bf16 operands, f32 accumulation.
    h = jnp.dot(wb_ref[0:64, :], h, preferred_element_type=jnp.float32)
    h = bias_relu(h, b2, jnp.bfloat16)                               # (64, TB)

    # fc3 : (32,64) @ (64,TB)
    h = jnp.dot(wb_ref[64:96, 0:64], h, preferred_element_type=jnp.float32)
    h = bias_relu(h, b3, jnp.bfloat16)                               # (32, TB)

    # fc4 : (8,32) @ (32,TB)
    h = jnp.dot(wb_ref[96:104, 0:32], h, preferred_element_type=jnp.float32)
    h = bias_relu(h, b4, jnp.float32)                                # (8, TB) f32

    # fc5 (N=1) + sigmoid: VPU multiply + sublane reduce (off the MXU).
    logits = jnp.sum(h * w5, axis=0, keepdims=True) + b5             # (1, TB)
    o_ref[...] = jax.nn.sigmoid(logits)


# ---------------- Wrapper ----------------

def _round_up(n, m):
    return ((n + m - 1) // m) * m


def _pick_elem_dtype():
    """bf16 elementwise on chips with a bf16 VPU (v6e/v7x); f32 otherwise."""
    try:
        kind = jax.devices()[0].device_kind.lower()
    except Exception:
        return jnp.float32
    for old in ("v2", "v3", "v4", "v5"):
        if old in kind:
            return jnp.float32
    return jnp.bfloat16


def mlp_forward(x, kernel_params, *, batch_tile=2048):
    """x: (B, 55) float32. Returns (B, 1) float32 in (0, 1)."""
    B, D_in = x.shape
    assert D_in == 55
    w1t, w_blob, fb_blob = kernel_params

    # Bucketed power-of-two batch tile (>=256, <=batch_tile).  The tile is
    # shrunk so the grid has >=2 steps whenever B allows it (v7x has 2 TCs).
    # Only log2 bucket count of distinct tiles => bounded recompiles; for
    # production serving, pad B upstream to a fixed bucket to avoid retraces.
    tb = 256
    while tb * 2 <= batch_tile and B > tb * 2:
        tb *= 2
    Bp = _round_up(B, tb)

    xp = x if Bp == B else jnp.pad(x, ((0, Bp - B), (0, 0)))

    elem_dtype = _pick_elem_dtype()
    kernel = functools.partial(mlp_kernel, elem_dtype=elem_dtype)

    in_specs = [
        pl.BlockSpec((tb, D_in), lambda i: (i, 0)),          # x, tiled over batch
        pl.BlockSpec(w1t.shape, lambda i: (0, 0)),           # fc1 weight (f32)
        pl.BlockSpec(w_blob.shape, lambda i: (0, 0)),        # fc2-4 weight blob (bf16)
        pl.BlockSpec(fb_blob.shape, lambda i: (0, 0)),       # biases + fc5 (f32)
    ]
    out_spec = pl.BlockSpec((1, tb), lambda i: (0, i))       # lane-dense output row

    out = pl.pallas_call(
        kernel,
        out_shape=jax.ShapeDtypeStruct((1, Bp), jnp.float32),
        grid_spec=pltpu.PrefetchScalarGridSpec(
            num_scalar_prefetch=0,
            grid=(Bp // tb,),
            in_specs=in_specs,
            out_specs=out_spec,
        ),
        compiler_params=pltpu.CompilerParams(
            dimension_semantics=("parallel",)),
    )(xp, w1t, w_blob, fb_blob)

    return out[0, :B].reshape(B, 1)


# ---------------- Deterministic parameter init ----------------

def init_params(key):
    """Mimics PyTorch nn.Linear default init (uniform +/- 1/sqrt(fan_in)).
    Weights in PyTorch layout (out_dim, in_dim), biases (out_dim,), all f32."""
    dims = [55, 128, 64, 32, 8, 1]
    params = []
    for i in range(len(dims) - 1):
        fan_in, fan_out = dims[i], dims[i + 1]
        key, kw, kb = jax.random.split(key, 3)
        bound = 1.0 / (fan_in ** 0.5)
        w = jax.random.uniform(kw, (fan_out, fan_in), jnp.float32,
                               minval=-bound, maxval=bound)
        b = jax.random.uniform(kb, (fan_out,), jnp.float32,
                               minval=-bound, maxval=bound)
        params.append((w, b))
    return params


def pack_params(params):
    """Kernel-side layout:
       - fc1 weight pre-transposed to (55, 128) f32 (batch-major fc1),
       - fc2-4 weights packed into one zero-padded (104, 128) bf16 blob,
       - biases + fc5 weight + fc5 bias stacked into one (241, 1) f32 column."""
    (w1, b1), (w2, b2), (w3, b3), (w4, b4), (w5, b5) = params

    w1t = jnp.asarray(w1.T, jnp.float32)                              # (55, 128)

    wb = jnp.zeros((104, 128), jnp.bfloat16)
    wb = wb.at[0:64, 0:128].set(w2.astype(jnp.bfloat16))              # (64,128)
    wb = wb.at[64:96, 0:64].set(w3.astype(jnp.bfloat16))              # (32,64)
    wb = wb.at[96:104, 0:32].set(w4.astype(jnp.bfloat16))             # (8,32)

    fb = jnp.concatenate(
        [b1, b2, b3, b4, w5.reshape(-1), b5]).astype(jnp.float32).reshape(-1, 1)
    assert fb.shape == (241, 1)

    return (w1t, wb, fb)


# ---------------- Reference (plain JAX, f32) ----------------

def mlp_reference(x, params):
    h = x
    for i, (w, b) in enumerate(params):
        h = h @ w.T + b
        if i < len(params) - 1:
            h = jnp.maximum(h, 0.0)
    return jax.nn.sigmoid(h)


if __name__ == "__main__":
    key = jax.random.PRNGKey(0)
    key, kx = jax.random.split(key)

    params = init_params(key)
    kparams = pack_params(params)
    fwd = jax.jit(lambda xx: mlp_forward(xx, kparams))

    # Small test batch (pads to one 256-row tile, grid=(1,)).
    B = 64
    x = jax.random.normal(kx, (B, 55), jnp.float32)
    out = jax.block_until_ready(fwd(x))
    ref = mlp_reference(x, params)
    assert out.shape == (B, 1)
    max_err = float(jnp.max(jnp.abs(out - ref)))
    # bf16 hidden-layer matmuls => loosened tolerance vs the f32 reference.
    assert max_err < 2e-2, f"mismatch vs reference: max abs err {max_err}"

    # Ragged batch exercising a multi-step grid (grid=(2,), last tile partial).
    B2 = 600
    x2 = jax.random.normal(jax.random.PRNGKey(1), (B2, 55), jnp.float32)
    out2 = jax.block_until_ready(fwd(x2))
    ref2 = mlp_reference(x2, params)
    assert out2.shape == (B2, 1)
    max_err2 = float(jnp.max(jnp.abs(out2 - ref2)))
    assert max_err2 < 2e-2, f"mismatch vs reference: max abs err {max_err2}"

    print("KERNEL_OK")
</pallas_src>

<mosaic_0001>
module attributes {stable_mosaic.version = 11 : i64} {
  func.func @mlp_kernel(%arg0: i32, %arg1: memref<256x55xf32, #tpu.memory_space<vmem>>, %arg2: memref<55x128xf32, #tpu.memory_space<vmem>>, %arg3: memref<104x128xbf16, #tpu.memory_space<vmem>>, %arg4: memref<241x1xf32, #tpu.memory_space<vmem>>, %arg5: memref<1x256xf32, #tpu.memory_space<vmem>>) attributes {dimension_semantics = [#tpu.dimension_semantics<parallel>], iteration_bounds = array<i64: 1>, scalar_prefetch = 0 : i64, scratch_operands = 0 : i64, tpu.core_type = #tpu.core_type<tc>, window_params = [{transform_indices = @transform_0, window_bounds = array<i64: 256, 55>}, {pipeline_mode = #tpu.pipeline_mode<synchronous>, transform_indices = @transform_1, window_bounds = array<i64: 55, 128>}, {pipeline_mode = #tpu.pipeline_mode<synchronous>, transform_indices = @transform_2, window_bounds = array<i64: 104, 128>}, {pipeline_mode = #tpu.pipeline_mode<synchronous>, transform_indices = @transform_3, window_bounds = array<i64: 241, 1>}, {transform_indices = @transform_4, window_bounds = array<i64: 1, 256>}]} {
    %c0 = arith.constant 0 : index
    %c0_0 = arith.constant 0 : index
    %0 = vector.load %arg1[%c0, %c0_0] : memref<256x55xf32, #tpu.memory_space<vmem>>, vector<256x55xf32>
    %c0_1 = arith.constant 0 : index
    %c0_2 = arith.constant 0 : index
    %1 = vector.load %arg2[%c0_1, %c0_2] : memref<55x128xf32, #tpu.memory_space<vmem>>, vector<55x128xf32>
    %cst = arith.constant dense<0.000000e+00> : vector<256x128xf32>
    %2 = tpu.matmul %0, %1, %cst {dimension_numbers = #tpu.dot_dimension_numbers<[1], [0], [0], [1], [0, 0, 1, 1], [], []>} : vector<256x55xf32>, vector<55x128xf32>, vector<256x128xf32> -> vector<256x128xf32>
    %3 = tpu.transpose %2, [1, 0] : vector<256x128xf32> -> vector<128x256xf32>
    %c0_3 = arith.constant 0 : index
    %c0_4 = arith.constant 0 : index
    %4 = vector.load %arg4[%c0_3, %c0_4] : memref<241x1xf32, #tpu.memory_space<vmem>>, vector<128x1xf32>
    %c128 = arith.constant 128 : index
    %c0_5 = arith.constant 0 : index
    %5 = vector.load %arg4[%c128, %c0_5] : memref<241x1xf32, #tpu.memory_space<vmem>>, vector<64x1xf32>
    %c192 = arith.constant 192 : index
    %c0_6 = arith.constant 0 : index
    %6 = vector.load %arg4[%c192, %c0_6] : memref<241x1xf32, #tpu.memory_space<vmem>>, vector<32x1xf32>
    %c224 = arith.constant 224 : index
    %c0_7 = arith.constant 0 : index
    %7 = vector.load %arg4[%c224, %c0_7] : memref<241x1xf32, #tpu.memory_space<vmem>>, vector<8x1xf32>
    %c232 = arith.constant 232 : index
    %c0_8 = arith.constant 0 : index
    %8 = vector.load %arg4[%c232, %c0_8] : memref<241x1xf32, #tpu.memory_space<vmem>>, vector<8x1xf32>
    %c240 = arith.constant 240 : index
    %c0_9 = arith.constant 0 : index
    %9 = vector.load %arg4[%c240, %c0_9] : memref<241x1xf32, #tpu.memory_space<vmem>>, vector<1x1xf32>
    %10 = arith.truncf %3 : vector<128x256xf32> to vector<128x256xbf16>
    %11 = arith.truncf %4 : vector<128x1xf32> to vector<128x1xbf16>
    %12 = vector.broadcast %11 : vector<128x1xbf16> to vector<128x256xbf16>
    %13 = arith.addf %10, %12 : vector<128x256xbf16>
    %cst_10 = arith.constant 0.000000e+00 : bf16
    %14 = vector.broadcast %cst_10 : bf16 to vector<128x256xbf16>
    %15 = arith.maximumf %13, %14 : vector<128x256xbf16>
    %c0_11 = arith.constant 0 : index
    %c0_12 = arith.constant 0 : index
    %16 = vector.load %arg3[%c0_11, %c0_12] : memref<104x128xbf16, #tpu.memory_space<vmem>>, vector<64x128xbf16>
    %cst_13 = arith.constant dense<0.000000e+00> : vector<64x256xf32>
    %17 = tpu.matmul %16, %15, %cst_13 {dimension_numbers = #tpu.dot_dimension_numbers<[1], [0], [0], [1], [0, 0, 1, 1], [], []>} : vector<64x128xbf16>, vector<128x256xbf16>, vector<64x256xf32> -> vector<64x256xf32>
    %18 = arith.truncf %17 : vector<64x256xf32> to vector<64x256xbf16>
    %19 = arith.truncf %5 : vector<64x1xf32> to vector<64x1xbf16>
    %20 = vector.broadcast %19 : vector<64x1xbf16> to vector<64x256xbf16>
    %21 = arith.addf %18, %20 : vector<64x256xbf16>
    %cst_14 = arith.constant 0.000000e+00 : bf16
    %22 = vector.broadcast %cst_14 : bf16 to vector<64x256xbf16>
    %23 = arith.maximumf %21, %22 : vector<64x256xbf16>
    %c64 = arith.constant 64 : index
    %c0_15 = arith.constant 0 : index
    %24 = vector.load %arg3[%c64, %c0_15] : memref<104x128xbf16, #tpu.memory_space<vmem>>, vector<32x64xbf16>
    %cst_16 = arith.constant dense<0.000000e+00> : vector<32x256xf32>
    %25 = tpu.matmul %24, %23, %cst_16 {dimension_numbers = #tpu.dot_dimension_numbers<[1], [0], [0], [1], [0, 0, 1, 1], [], []>} : vector<32x64xbf16>, vector<64x256xbf16>, vector<32x256xf32> -> vector<32x256xf32>
    %26 = arith.truncf %25 : vector<32x256xf32> to vector<32x256xbf16>
    %27 = arith.truncf %6 : vector<32x1xf32> to vector<32x1xbf16>
    %28 = vector.broadcast %27 : vector<32x1xbf16> to vector<32x256xbf16>
    %29 = arith.addf %26, %28 : vector<32x256xbf16>
    %cst_17 = arith.constant 0.000000e+00 : bf16
    %30 = vector.broadcast %cst_17 : bf16 to vector<32x256xbf16>
    %31 = arith.maximumf %29, %30 : vector<32x256xbf16>
    %c96 = arith.constant 96 : index
    %c0_18 = arith.constant 0 : index
    %32 = vector.load %arg3[%c96, %c0_18] : memref<104x128xbf16, #tpu.memory_space<vmem>>, vector<8x32xbf16>
    %cst_19 = arith.constant dense<0.000000e+00> : vector<8x256xf32>
    %33 = tpu.matmul %32, %31, %cst_19 {dimension_numbers = #tpu.dot_dimension_numbers<[1], [0], [0], [1], [0, 0, 1, 1], [], []>} : vector<8x32xbf16>, vector<32x256xbf16>, vector<8x256xf32> -> vector<8x256xf32>
    %34 = arith.truncf %33 : vector<8x256xf32> to vector<8x256xbf16>
    %35 = arith.truncf %7 : vector<8x1xf32> to vector<8x1xbf16>
    %36 = vector.broadcast %35 : vector<8x1xbf16> to vector<8x256xbf16>
    %37 = arith.addf %34, %36 : vector<8x256xbf16>
    %cst_20 = arith.constant 0.000000e+00 : bf16
    %38 = vector.broadcast %cst_20 : bf16 to vector<8x256xbf16>
    %39 = arith.maximumf %37, %38 : vector<8x256xbf16>
    %40 = arith.extf %39 : vector<8x256xbf16> to vector<8x256xf32>
    %41 = vector.broadcast %8 : vector<8x1xf32> to vector<8x256xf32>
    %42 = arith.mulf %40, %41 : vector<8x256xf32>
    %cst_21 = arith.constant dense<0.000000e+00> : vector<256xf32>
    %43 = vector.multi_reduction <add>, %42, %cst_21 [0] : vector<8x256xf32> to vector<256xf32>
    %44 = vector.shape_cast %43 : vector<256xf32> to vector<1x256xf32>
    %45 = vector.broadcast %9 : vector<1x1xf32> to vector<1x256xf32>
    %46 = arith.addf %44, %45 : vector<1x256xf32>
    %47 = arith.negf %46 : vector<1x256xf32>
    %48 = math.exp %47 : vector<1x256xf32>
    %cst_22 = arith.constant 1.000000e+00 : f32
    %49 = vector.broadcast %cst_22 : f32 to vector<1x256xf32>
    %50 = arith.addf %49, %48 : vector<1x256xf32>
    %51 = arith.divf %49, %50 : vector<1x256xf32>
    %c0_23 = arith.constant 0 : index
    %c0_24 = arith.constant 0 : index
    %52 = vector.load %arg5[%c0_23, %c0_24] : memref<1x256xf32, #tpu.memory_space<vmem>>, vector<1x256xf32>
    tpu.vector_store %arg5[%c0_23, %c0_24], %51 {strides = array<i32>} : memref<1x256xf32, #tpu.memory_space<vmem>>, vector<1x256xf32>,
    return
  }
  func.func @transform_0(%arg0: i32) -> (i32, i32) {
    %c0_i32 = arith.constant 0 : i32
    %c0_i32_0 = arith.constant 0 : i32
    return %arg0, %c0_i32 : i32, i32
  }
  func.func @transform_1(%arg0: i32) -> (i32, i32) {
    %c0_i32 = arith.constant 0 : i32
    %c0_i32_0 = arith.constant 0 : i32
    %c0_i32_1 = arith.constant 0 : i32
    return %c0_i32, %c0_i32_0 : i32, i32
  }
  func.func @transform_2(%arg0: i32) -> (i32, i32) {
    %c0_i32 = arith.constant 0 : i32
    %c0_i32_0 = arith.constant 0 : i32
    %c0_i32_1 = arith.constant 0 : i32
    return %c0_i32, %c0_i32_0 : i32, i32
  }
  func.func @transform_3(%arg0: i32) -> (i32, i32) {
    %c0_i32 = arith.constant 0 : i32
    %c0_i32_0 = arith.constant 0 : i32
    %c0_i32_1 = arith.constant 0 : i32
    return %c0_i32, %c0_i32_0 : i32, i32
  }
  func.func @transform_4(%arg0: i32) -> (i32, i32) {
    %c0_i32 = arith.constant 0 : i32
    %c0_i32_0 = arith.constant 0 : i32
    return %c0_i32, %arg0 : i32, i32
  }
}

</mosaic_0001>

<llo_original>
// kernel: _lambda_.1
$region0: #{_lambda_.1}
  #allocation0 [shape = 'u32[]', space=smem, size = 0x4, offset = 0x4, fixed_abs, tag = 'smem constant byte address 0x4 - core index']
  #allocation1 [shape = 'u32[144,128]{1,0:T(1,128)}', space=vmem, size = 0x12000, scoped, tag = 'internal scratch']
  %s0 = inlined_call_operand.vmem [shape: f32[256,55], index: 0, kind: input, shape index: {}]
  %s1 = inlined_call_operand.vmem [shape: f32[55,128], index: 1, kind: input, shape index: {}]
  %s2 = inlined_call_operand.vmem [shape: bf16[104,128], index: 2, kind: input, shape index: {}]
  %s3 = inlined_call_operand.vmem [shape: f32[241,1], index: 3, kind: input, shape index: {}]
  %s4 = inlined_call_operand.vmem [shape: f32[1,256], index: 4, kind: output, shape index: {}]
  %s5 = sld [smem:[#allocation0]]
  $region26: #{_lambda_.1} parent=0
    _
  %s7 = ssub.s32 1, %s5
  %s8 = scalar_select 0, %s7, %s5
  // Predicated region
  $region2: #{_lambda_.1} parent=0 // pred_check
    _
  $region3: #{_lambda_.1} parent=0 // pred_check_branch
    %10 = sbr.rel (0) target = $region5
  $region4: #{_lambda_.1} parent=0 // pred_region
    _
  $region5: #{_lambda_.1} parent=0 // pred_fallthru
    _
  // Predicated region
  $region6: #{_lambda_.1} parent=0 // pred_check
    _
  $region7: #{_lambda_.1} parent=0 // pred_check_branch
    %12 = sbr.rel (0) target = $region9
  $region8: #{_lambda_.1} parent=0 // pred_region
    _
  $region9: #{_lambda_.1} parent=0 // pred_fallthru
    _
  // Predicated region
  $region10: #{_lambda_.1} parent=0 // pred_check
    _
  $region11: #{_lambda_.1} parent=0 // pred_check_branch
    %14 = sbr.rel (0) target = $region13
  $region12: #{_lambda_.1} parent=0 // pred_region
    _
  $region13: #{_lambda_.1} parent=0 // pred_fallthru
    _
  // Predicated region
  $region14: #{_lambda_.1} parent=0 // pred_check
    _
  $region15: #{_lambda_.1} parent=0 // pred_check_branch
    %16 = sbr.rel (0) target = $region17
  $region16: #{_lambda_.1} parent=0 // pred_region
    _
  $region17: #{_lambda_.1} parent=0 // pred_fallthru
    _
  %v18 = vld [vmem:[%s0] sm:$0xff]
  %v19 = vld [vmem:[%s0 + $0x8] sm:$0xff]
  %v20 = vld [vmem:[%s0 + $0x10] sm:$0xff]
  %v21 = vld [vmem:[%s0 + $0x18] sm:$0xff]
  %v22 = vld [vmem:[%s0 + $0x20] sm:$0xff]
  %v23 = vld [vmem:[%s0 + $0x28] sm:$0xff]
  %v24 = vld [vmem:[%s0 + $0x30] sm:$0xff]
  %v25 = vld [vmem:[%s0 + $0x38] sm:$0xff]
  %v26 = vld [vmem:[%s0 + $0x40] sm:$0xff]
  %v27 = vld [vmem:[%s0 + $0x48] sm:$0xff]
  %v28 = vld [vmem:[%s0 + $0x50] sm:$0xff]
  %v29 = vld [vmem:[%s0 + $0x58] sm:$0xff]
  %v30 = vld [vmem:[%s0 + $0x60] sm:$0xff]
  %v31 = vld [vmem:[%s0 + $0x68] sm:$0xff]
  %v32 = vld [vmem:[%s0 + $0x70] sm:$0xff]
  %v33 = vld [vmem:[%s0 + $0x78] sm:$0xff]
  %v34 = vld [vmem:[%s0 + $0x80] sm:$0xff]
  %v35 = vld [vmem:[%s0 + $0x88] sm:$0xff]
  %v36 = vld [vmem:[%s0 + $0x90] sm:$0xff]
  %v37 = vld [vmem:[%s0 + $0x98] sm:$0xff]
  %v38 = vld [vmem:[%s0 + $0xa0] sm:$0xff]
  %v39 = vld [vmem:[%s0 + $0xa8] sm:$0xff]
  %v40 = vld [vmem:[%s0 + $0xb0] sm:$0xff]
  %v41 = vld [vmem:[%s0 + $0xb8] sm:$0xff]
  %v42 = vld [vmem:[%s0 + $0xc0] sm:$0xff]
  %v43 = vld [vmem:[%s0 + $0xc8] sm:$0xff]
  %v44 = vld [vmem:[%s0 + $0xd0] sm:$0xff]
  %v45 = vld [vmem:[%s0 + $0xd8] sm:$0xff]
  %v46 = vld [vmem:[%s0 + $0xe0] sm:$0xff]
  %v47 = vld [vmem:[%s0 + $0xe8] sm:$0xff]
  %v48 = vld [vmem:[%s0 + $0xf0] sm:$0xff]
  %v49 = vld [vmem:[%s0 + $0xf8] sm:$0xff]
  %v50 = vld [vmem:[%s1] sm:$0xff]
  %v51 = vld [vmem:[%s1 + $0x8] sm:$0xff]
  %v52 = vld [vmem:[%s1 + $0x10] sm:$0xff]
  %v53 = vld [vmem:[%s1 + $0x18] sm:$0xff]
  %v54 = vld [vmem:[%s1 + $0x20] sm:$0xff]
  %v55 = vld [vmem:[%s1 + $0x28] sm:$0xff]
  %v56 = vld [vmem:[%s1 + $0x30] sm:$0x7f]
  %vm57 = vcmask 449536
  %v59 = vsel %vm57, %v18, 0
  %v62 = vsel %vm57, %v19, 0
  %v65 = vsel %vm57, %v20, 0
  %v68 = vsel %vm57, %v21, 0
  %v71 = vsel %vm57, %v22, 0
  %v74 = vsel %vm57, %v23, 0
  %v77 = vsel %vm57, %v24, 0
  %v80 = vsel %vm57, %v25, 0
  %v83 = vsel %vm57, %v26, 0
  %v86 = vsel %vm57, %v27, 0
  %v89 = vsel %vm57, %v28, 0
  %v92 = vsel %vm57, %v29, 0
  %v95 = vsel %vm57, %v30, 0
  %v98 = vsel %vm57, %v31, 0
  %v101 = vsel %vm57, %v32, 0
  %v104 = vsel %vm57, %v33, 0
  %v107 = vsel %vm57, %v34, 0
  %v110 = vsel %vm57, %v35, 0
  %v113 = vsel %vm57, %v36, 0
  %v116 = vsel %vm57, %v37, 0
  %v119 = vsel %vm57, %v38, 0
  %v122 = vsel %vm57, %v39, 0
  %v125 = vsel %vm57, %v40, 0
  %v128 = vsel %vm57, %v41, 0
  %v131 = vsel %vm57, %v42, 0
  %v134 = vsel %vm57, %v43, 0
  %v137 = vsel %vm57, %v44, 0
  %v140 = vsel %vm57, %v45, 0
  %v143 = vsel %vm57, %v46, 0
  %v146 = vsel %vm57, %v47, 0
  %v149 = vsel %vm57, %v48, 0
  %v152 = vsel %vm57, %v49, 0
  %vm154 = vcmask 1046528
  %v156 = vsel %vm154, %v56, 0
  %158 = vmatprep.subr.mxu0 0.0
  %159 = vmatpush1.msra.mxu0 %v50
  %160 = vmatprep.subr.mxu0 0.0
  %161 = vmatpush1.msra.mxu0 %v51
  %162 = vmatprep.subr.mxu0 0.0
  %163 = vmatpush1.msra.mxu0 %v52
  %164 = vmatprep.subr.mxu0 0.0
  %165 = vmatpush1.msra.mxu0 %v53
  %166 = vmatprep.subr.mxu0 0.0
  %167 = vmatpush1.msra.mxu0 %v54
  %168 = vmatprep.subr.mxu0 0.0
  %169 = vmatpush1.msra.mxu0 %v55
  %170 = vmatprep.subr.mxu0 0.0
  %171 = vmatpush1.msra.mxu0 %v156
  %172 = vmatprep.subr.mxu0 0.0
  %173 = vmatpush1.msra.mxu0 0.0
  %174 = vmatprep.subr.mxu0 0.0
  %175 = vmatpush1.msra.mxu0 0.0
  %176 = vmatprep.subr.mxu0 0.0
  %177 = vmatpush1.msra.mxu0 0.0
  %178 = vmatprep.subr.mxu0 0.0
  %179 = vmatpush1.msra.mxu0 0.0
  %180 = vmatprep.subr.mxu0 0.0
  %181 = vmatpush1.msra.mxu0 0.0
  %182 = vmatprep.subr.mxu0 0.0
  %183 = vmatpush1.msra.mxu0 0.0
  %184 = vmatprep.subr.mxu0 0.0
  %185 = vmatpush1.msra.mxu0 0.0
  %186 = vmatprep.subr.mxu0 0.0
  %187 = vmatpush1.msra.mxu0 0.0
  %188 = vmatprep.subr.mxu0 0.0
  %189 = vmatpush1.msra.mxu0 0.0
  %190 = vmatprep.subr.mxu0 0.0
  %191 = vmatpush1.msra.mxu0 0.0
  %192 = vmatprep.subr.mxu0 0.0
  %193 = vmatpush1.msra.mxu0 0.0
  %194 = vmatprep.subr.mxu0 0.0
  %195 = vmatpush1.msra.mxu0 0.0
  %196 = vmatprep.subr.mxu0 0.0
  %197 = vmatpush1.msra.mxu0 0.0
  %198 = vmatprep.subr.mxu0 0.0
  %199 = vmatpush1.msra.mxu0 0.0
  %200 = vmatprep.subr.mxu0 0.0
  %201 = vmatpush1.msra.mxu0 0.0
  %202 = vmatprep.subr.mxu0 0.0
  %203 = vmatpush1.msra.mxu0 0.0
  %204 = vmatprep.subr.mxu0 0.0
  %205 = vmatpush1.msra.mxu0 0.0
  %206 = vmatprep.subr.mxu0 0.0
  %207 = vmatpush1.msra.mxu0 0.0
  %208 = vmatprep.subr.mxu0 0.0
  %209 = vmatpush1.msra.mxu0 0.0
  %210 = vmatprep.subr.mxu0 0.0
  %211 = vmatpush1.msra.mxu0 0.0
  %212 = vmatprep.subr.mxu0 0.0
  %213 = vmatpush1.msra.mxu0 0.0
  %214 = vmatprep.subr.mxu0 0.0
  %215 = vmatpush1.msra.mxu0 0.0
  %216 = vmatprep.subr.mxu0 0.0
  %217 = vmatpush1.msra.mxu0 0.0
  %218 = vmatprep.subr.mxu0 0.0
  %219 = vmatpush1.msra.mxu0 0.0
  %220 = vmatprep.subr.mxu0 0.0
  %221 = vmatpush1.msra.mxu0 0.0
  %222 = vmatprep.mubr.f32.mxu0 0.0
  %223 = vmatmul.mubr.f32.gmra.mrb[0].mxu0 %v59
  %v224 = vpop.f32.mrb[0].mxu0
  %v225 = vadd.f32 0.0, %v224
  %v226 = vpop.f32.mrb[0].mxu0
  %227 = vmatprep.mubr.f32.mxu0 0.0
  %228 = vmatmul.mubr.f32.gmra.mrb[0].mxu0 %v62
  %v229 = vpop.f32.mrb[0].mxu0
  %v230 = vadd.f32 0.0, %v229
  %v231 = vpop.f32.mrb[0].mxu0
  %232 = vmatprep.mubr.f32.mxu0 0.0
  %233 = vmatmul.mubr.f32.gmra.mrb[0].mxu0 %v65
  %v234 = vpop.f32.mrb[0].mxu0
  %v235 = vadd.f32 0.0, %v234
  %v236 = vpop.f32.mrb[0].mxu0
  %237 = vmatprep.mubr.f32.mxu0 0.0
  %238 = vmatmul.mubr.f32.gmra.mrb[0].mxu0 %v68
  %v239 = vpop.f32.mrb[0].mxu0
  %v240 = vadd.f32 0.0, %v239
  %v241 = vpop.f32.mrb[0].mxu0
  %242 = vmatprep.mubr.f32.mxu0 0.0
  %243 = vmatmul.mubr.f32.gmra.mrb[0].mxu0 %v71
  %v244 = vpop.f32.mrb[0].mxu0
  %v245 = vadd.f32 0.0, %v244
  %v246 = vpop.f32.mrb[0].mxu0
  %247 = vmatprep.mubr.f32.mxu0 0.0
  %248 = vmatmul.mubr.f32.gmra.mrb[0].mxu0 %v74
  %v249 = vpop.f32.mrb[0].mxu0
  %v250 = vadd.f32 0.0, %v249
  %v251 = vpop.f32.mrb[0].mxu0
  %252 = vmatprep.mubr.f32.mxu0 0.0
  %253 = vmatmul.mubr.f32.gmra.mrb[0].mxu0 %v77
  %v254 = vpop.f32.mrb[0].mxu0
  %v255 = vadd.f32 0.0, %v254
  %v256 = vpop.f32.mrb[0].mxu0
  %257 = vmatprep.mubr.f32.mxu0 0.0
  %258 = vmatmul.mubr.f32.gmra.mrb[0].mxu0 %v80
  %v259 = vpop.f32.mrb[0].mxu0
  %v260 = vadd.f32 0.0, %v259
  %v261 = vpop.f32.mrb[0].mxu0
  %262 = vmatprep.mubr.f32.mxu0 0.0
  %263 = vmatmul.mubr.f32.gmra.mrb[0].mxu0 %v83
  %v264 = vpop.f32.mrb[0].mxu0
  %v265 = vadd.f32 0.0, %v264
  %v266 = vpop.f32.mrb[0].mxu0
  %267 = vmatprep.mubr.f32.mxu0 0.0
  %268 = vmatmul.mubr.f32.gmra.mrb[0].mxu0 %v86
  %v269 = vpop.f32.mrb[0].mxu0
  %v270 = vadd.f32 0.0, %v269
  %v271 = vpop.f32.mrb[0].mxu0
  %272 = vmatprep.mubr.f32.mxu0 0.0
  %273 = vmatmul.mubr.f32.gmra.mrb[0].mxu0 %v89
  %v274 = vpop.f32.mrb[0].mxu0
  %v275 = vadd.f32 0.0, %v274
  %v276 = vpop.f32.mrb[0].mxu0
  %277 = vmatprep.mubr.f32.mxu0 0.0
  %278 = vmatmul.mubr.f32.gmra.mrb[0].mxu0 %v92
  %v279 = vpop.f32.mrb[0].mxu0
  %v280 = vadd.f32 0.0, %v279
  %v281 = vpop.f32.mrb[0].mxu0
  %282 = vmatprep.mubr.f32.mxu0 0.0
  %283 = vmatmul.mubr.f32.gmra.mrb[0].mxu0 %v95
  %v284 = vpop.f32.mrb[0].mxu0
  %v285 = vadd.f32 0.0, %v284
  %v286 = vpop.f32.mrb[0].mxu0
  %287 = vmatprep.mubr.f32.mxu0 0.0
  %288 = vmatmul.mubr.f32.gmra.mrb[0].mxu0 %v98
  %v289 = vpop.f32.mrb[0].mxu0
  %v290 = vadd.f32 0.0, %v289
  %v291 = vpop.f32.mrb[0].mxu0
  %292 = vmatprep.mubr.f32.mxu0 0.0
  %293 = vmatmul.mubr.f32.gmra.mrb[0].mxu0 %v101
  %v294 = vpop.f32.mrb[0].mxu0
  %v295 = vadd.f32 0.0, %v294
  %v296 = vpop.f32.mrb[0].mxu0
  %297 = vmatprep.mubr.f32.mxu0 0.0
  %298 = vmatmul.mubr.f32.gmra.mrb[0].mxu0 %v104
  %v299 = vpop.f32.mrb[0].mxu0
  %v300 = vadd.f32 0.0, %v299
  %v301 = vpop.f32.mrb[0].mxu0
  %302 = vmatprep.mubr.f32.mxu0 0.0
  %303 = vmatmul.mubr.f32.gmra.mrb[0].mxu0 %v107
  %v304 = vpop.f32.mrb[0].mxu0
  %v305 = vadd.f32 0.0, %v304
  %v306 = vpop.f32.mrb[0].mxu0
  %307 = vmatprep.mubr.f32.mxu0 0.0
  %308 = vmatmul.mubr.f32.gmra.mrb[0].mxu0 %v110
  %v309 = vpop.f32.mrb[0].mxu0
  %v310 = vadd.f32 0.0, %v309
  %v311 = vpop.f32.mrb[0].mxu0
  %312 = vmatprep.mubr.f32.mxu0 0.0
  %313 = vmatmul.mubr.f32.gmra.mrb[0].mxu0 %v113
  %v314 = vpop.f32.mrb[0].mxu0
  %v315 = vadd.f32 0.0, %v314
  %v316 = vpop.f32.mrb[0].mxu0
  %317 = vmatprep.mubr.f32.mxu0 0.0
  %318 = vmatmul.mubr.f32.gmra.mrb[0].mxu0 %v116
  %v319 = vpop.f32.mrb[0].mxu0
  %v320 = vadd.f32 0.0, %v319
  %v321 = vpop.f32.mrb[0].mxu0
  %322 = vmatprep.mubr.f32.mxu0 0.0
  %323 = vmatmul.mubr.f32.gmra.mrb[0].mxu0 %v119
  %v324 = vpop.f32.mrb[0].mxu0
  %v325 = vadd.f32 0.0, %v324
  %v326 = vpop.f32.mrb[0].mxu0
  %327 = vmatprep.mubr.f32.mxu0 0.0
  %328 = vmatmul.mubr.f32.gmra.mrb[0].mxu0 %v122
  %v329 = vpop.f32.mrb[0].mxu0
  %v330 = vadd.f32 0.0, %v329
  %v331 = vpop.f32.mrb[0].mxu0
  %332 = vmatprep.mubr.f32.mxu0 0.0
  %333 = vmatmul.mubr.f32.gmra.mrb[0].mxu0 %v125
  %v334 = vpop.f32.mrb[0].mxu0
  %v335 = vadd.f32 0.0, %v334
  %v336 = vpop.f32.mrb[0].mxu0
  %337 = vmatprep.mubr.f32.mxu0 0.0
  %338 = vmatmul.mubr.f32.gmra.mrb[0].mxu0 %v128
  %v339 = vpop.f32.mrb[0].mxu0
  %v340 = vadd.f32 0.0, %v339
  %v341 = vpop.f32.mrb[0].mxu0
  %342 = vmatprep.mubr.f32.mxu0 0.0
  %343 = vmatmul.mubr.f32.gmra.mrb[0].mxu0 %v131
  %v344 = vpop.f32.mrb[0].mxu0
  %v345 = vadd.f32 0.0, %v344
  %v346 = vpop.f32.mrb[0].mxu0
  %347 = vmatprep.mubr.f32.mxu0 0.0
  %348 = vmatmul.mubr.f32.gmra.mrb[0].mxu0 %v134
  %v349 = vpop.f32.mrb[0].mxu0
  %v350 = vadd.f32 0.0, %v349
  %v351 = vpop.f32.mrb[0].mxu0
  %352 = vmatprep.mubr.f32.mxu0 0.0
  %353 = vmatmul.mubr.f32.gmra.mrb[0].mxu0 %v137
  %v354 = vpop.f32.mrb[0].mxu0
  %v355 = vadd.f32 0.0, %v354
  %v356 = vpop.f32.mrb[0].mxu0
  %357 = vmatprep.mubr.f32.mxu0 0.0
  %358 = vmatmul.mubr.f32.gmra.mrb[0].mxu0 %v140
  %v359 = vpop.f32.mrb[0].mxu0
  %v360 = vadd.f32 0.0, %v359
  %v361 = vpop.f32.mrb[0].mxu0
  %362 = vmatprep.mubr.f32.mxu0 0.0
  %363 = vmatmul.mubr.f32.gmra.mrb[0].mxu0 %v143
  %v364 = vpop.f32.mrb[0].mxu0
  %v365 = vadd.f32 0.0, %v364
  %v366 = vpop.f32.mrb[0].mxu0
  %367 = vmatprep.mubr.f32.mxu0 0.0
  %368 = vmatmul.mubr.f32.gmra.mrb[0].mxu0 %v146
  %v369 = vpop.f32.mrb[0].mxu0
  %v370 = vadd.f32 0.0, %v369
  %v371 = vpop.f32.mrb[0].mxu0
  %372 = vmatprep.mubr.f32.mxu0 0.0
  %373 = vmatmul.mubr.f32.gmra.mrb[0].mxu0 %v149
  %v374 = vpop.f32.mrb[0].mxu0
  %v375 = vadd.f32 0.0, %v374
  %v376 = vpop.f32.mrb[0].mxu0
  %377 = vmatprep.mubr.f32.mxu0 0.0
  %378 = vmatmul.mubr.f32.gmra.mrb[0].mxu0 %v152
  %v379 = vpop.f32.mrb[0].mxu0
  %v380 = vadd.f32 0.0, %v379
  %v381 = vpop.f32.mrb[0].mxu0
  %382 = vdwg.mxu0
  %383 = vxpose.xlu0.b32.start [1/16] %v225, 128
  %384 = vxpose.xlu0.b32.cont [2/16] %v230, 128
  %385 = vxpose.xlu0.b32.cont [3/16] %v235, 128
  %386 = vxpose.xlu0.b32.cont [4/16] %v240, 128
  %387 = vxpose.xlu0.b32.cont [5/16] %v245, 128
  %388 = vxpose.xlu0.b32.cont [6/16] %v250, 128
  %389 = vxpose.xlu0.b32.cont [7/16] %v255, 128
  %390 = vxpose.xlu0.b32.cont [8/16] %v260, 128
  %391 = vxpose.xlu0.b32.cont [9/16] %v265, 128
  %392 = vxpose.xlu0.b32.cont [10/16] %v270, 128
  %393 = vxpose.xlu0.b32.cont [11/16] %v275, 128
  %394 = vxpose.xlu0.b32.cont [12/16] %v280, 128
  %395 = vxpose.xlu0.b32.cont [13/16] %v285, 128
  %396 = vxpose.xlu0.b32.cont [14/16] %v290, 128
  %397 = vxpose.xlu0.b32.cont [15/16] %v295, 128
  %398 = vxpose.xlu0.b32.end [16/16] %v300, 128
  %v399 = vpop.trf.xlu0
  %v400 = vpop.trf.xlu0
  %v401 = vpop.trf.xlu0
  %v402 = vpop.trf.xlu0
  %v403 = vpop.trf.xlu0
  %v404 = vpop.trf.xlu0
  %v405 = vpop.trf.xlu0
  %v406 = vpop.trf.xlu0
  %v407 = vpop.trf.xlu0
  %v408 = vpop.trf.xlu0
  %v409 = vpop.trf.xlu0
  %v410 = vpop.trf.xlu0
  %v411 = vpop.trf.xlu0
  %v412 = vpop.trf.xlu0
  %v413 = vpop.trf.xlu0
  %v414 = vpop.trf.xlu0
  %415 = vxpose.xlu0.b32.start [1/16] %v305, 128
  %416 = vxpose.xlu0.b32.cont [2/16] %v310, 128
  %417 = vxpose.xlu0.b32.cont [3/16] %v315, 128
  %418 = vxpose.xlu0.b32.cont [4/16] %v320, 128
  %419 = vxpose.xlu0.b32.cont [5/16] %v325, 128
  %420 = vxpose.xlu0.b32.cont [6/16] %v330, 128
  %421 = vxpose.xlu0.b32.cont [7/16] %v335, 128
  %422 = vxpose.xlu0.b32.cont [8/16] %v340, 128
  %423 = vxpose.xlu0.b32.cont [9/16] %v345, 128
  %424 = vxpose.xlu0.b32.cont [10/16] %v350, 128
  %425 = vxpose.xlu0.b32.cont [11/16] %v355, 128
  %426 = vxpose.xlu0.b32.cont [12/16] %v360, 128
  %427 = vxpose.xlu0.b32.cont [13/16] %v365, 128
  %428 = vxpose.xlu0.b32.cont [14/16] %v370, 128
  %429 = vxpose.xlu0.b32.cont [15/16] %v375, 128
  %430 = vxpose.xlu0.b32.end [16/16] %v380, 128
  %v431 = vpop.trf.xlu0
  %v432 = vpop.trf.xlu0
  %v433 = vpop.trf.xlu0
  %v434 = vpop.trf.xlu0
  %v435 = vpop.trf.xlu0
  %v436 = vpop.trf.xlu0
  %v437 = vpop.trf.xlu0
  %v438 = vpop.trf.xlu0
  %v439 = vpop.trf.xlu0
  %v440 = vpop.trf.xlu0
  %v441 = vpop.trf.xlu0
  %v442 = vpop.trf.xlu0
  %v443 = vpop.trf.xlu0
  %v444 = vpop.trf.xlu0
  %v445 = vpop.trf.xlu0
  %v446 = vpop.trf.xlu0
  %v447 = vld [vmem:[%s3] sm:$0xff]
  %v448 = vld [vmem:[%s3 + $0x8] sm:$0xff]
  %v449 = vld [vmem:[%s3 + $0x10] sm:$0xff]
  %v450 = vld [vmem:[%s3 + $0x18] sm:$0xff]
  %v451 = vld [vmem:[%s3 + $0x20] sm:$0xff]
  %v452 = vld [vmem:[%s3 + $0x28] sm:$0xff]
  %v453 = vld [vmem:[%s3 + $0x30] sm:$0xff]
  %v454 = vld [vmem:[%s3 + $0x38] sm:$0xff]
  %v455 = vld [vmem:[%s3 + $0x40] sm:$0xff]
  %v456 = vld [vmem:[%s3 + $0x48] sm:$0xff]
  %v457 = vld [vmem:[%s3 + $0x50] sm:$0xff]
  %v458 = vld [vmem:[%s3 + $0x58] sm:$0xff]
  %v459 = vld [vmem:[%s3 + $0x60] sm:$0xff]
  %v460 = vld [vmem:[%s3 + $0x68] sm:$0xff]
  %v461 = vld [vmem:[%s3 + $0x70] sm:$0xff]
  %v462 = vld [vmem:[%s3 + $0x78] sm:$0xff]
  %v463 = vld [vmem:[%s3 + $0x80] sm:$0xff]
  %v464 = vld [vmem:[%s3 + $0x88] sm:$0xff]
  %v465 = vld [vmem:[%s3 + $0x90] sm:$0xff]
  %v466 = vld [vmem:[%s3 + $0x98] sm:$0xff]
  %v467 = vld [vmem:[%s3 + $0xa0] sm:$0xff]
  %v468 = vld [vmem:[%s3 + $0xa8] sm:$0xff]
  %v469 = vld [vmem:[%s3 + $0xb0] sm:$0xff]
  %v470 = vld [vmem:[%s3 + $0xb8] sm:$0xff]
  %v471 = vld [vmem:[%s3 + $0xc0] sm:$0xff]
  %v472 = vld [vmem:[%s3 + $0xc8] sm:$0xff]
  %v473 = vld [vmem:[%s3 + $0xd0] sm:$0xff]
  %v474 = vld [vmem:[%s3 + $0xd8] sm:$0xff]
  %v475 = vld [vmem:[%s3 + $0xe0] sm:$0xff]
  %v476 = vld [vmem:[%s3 + $0xe8] sm:$0xff]
  %v477 = vld [vmem:[%s3 + $0xf0] sm:$0x1]
  %v478 = vpack.c.bf16 %v400, %v399
  %v479 = vpack.c.bf16 %v432, %v431
  %v480 = vpack.c.bf16 %v402, %v401
  %v481 = vpack.c.bf16 %v434, %v433
  %v482 = vpack.c.bf16 %v404, %v403
  %v483 = vpack.c.bf16 %v436, %v435
  %v484 = vpack.c.bf16 %v406, %v405
  %v485 = vpack.c.bf16 %v438, %v437
  %v486 = vpack.c.bf16 %v408, %v407
  %v487 = vpack.c.bf16 %v440, %v439
  %v488 = vpack.c.bf16 %v410, %v409
  %v489 = vpack.c.bf16 %v442, %v441
  %v490 = vpack.c.bf16 %v412, %v411
  %v491 = vpack.c.bf16 %v444, %v443
  %v492 = vpack.c.bf16 %v414, %v413
  %v493 = vpack.c.bf16 %v446, %v445
  %v494 = vpack.c.bf16 %v448, %v447
  %v495 = vpack.c.bf16 %v450, %v449
  %v496 = vpack.c.bf16 %v452, %v451
  %v497 = vpack.c.bf16 %v454, %v453
  %v498 = vpack.c.bf16 %v456, %v455
  %v499 = vpack.c.bf16 %v458, %v457
  %v500 = vpack.c.bf16 %v460, %v459
  %v501 = vpack.c.bf16 %v462, %v461
  %503 = vset.pattern.permute.xlu0 0
  %504 = vperm.xlu0 %503, %v494
  %v505 = vpop.permute.xlu0 %504
  %508 = vset.pattern.permute.xlu0 0
  %509 = vperm.xlu0 %508, %v495
  %v510 = vpop.permute.xlu0 %509
  %513 = vset.pattern.permute.xlu0 0
  %514 = vperm.xlu0 %513, %v496
  %v515 = vpop.permute.xlu0 %514
  %518 = vset.pattern.permute.xlu0 0
  %519 = vperm.xlu0 %518, %v497
  %v520 = vpop.permute.xlu0 %519
  %523 = vset.pattern.permute.xlu0 0
  %524 = vperm.xlu0 %523, %v498
  %v525 = vpop.permute.xlu0 %524
  %528 = vset.pattern.permute.xlu0 0
  %529 = vperm.xlu0 %528, %v499
  %v530 = vpop.permute.xlu0 %529
  %533 = vset.pattern.permute.xlu0 0
  %534 = vperm.xlu0 %533, %v500
  %v535 = vpop.permute.xlu0 %534
  %538 = vset.pattern.permute.xlu0 0
  %539 = vperm.xlu0 %538, %v501
  %v540 = vpop.permute.xlu0 %539
  %v542 = vadd.bf16 %v478, %v505
  %v543 = vadd.bf16 %v479, %v505
  %v544 = vadd.bf16 %v480, %v510
  %v545 = vadd.bf16 %v481, %v510
  %v546 = vadd.bf16 %v482, %v515
  %v547 = vadd.bf16 %v483, %v515
  %v548 = vadd.bf16 %v484, %v520
  %v549 = vadd.bf16 %v485, %v520
  %v550 = vadd.bf16 %v486, %v525
  %v551 = vadd.bf16 %v487, %v525
  %v552 = vadd.bf16 %v488, %v530
  %v553 = vadd.bf16 %v489, %v530
  %v554 = vadd.bf16 %v490, %v535
  %v555 = vadd.bf16 %v491, %v535
  %v556 = vadd.bf16 %v492, %v540
  %v557 = vadd.bf16 %v493, %v540
  %v558 = vmax.bf16 %v542, 0
  %v559 = vmax.bf16 %v543, 0
  %v560 = vmax.bf16 %v544, 0
  %v561 = vmax.bf16 %v545, 0
  %v562 = vmax.bf16 %v546, 0
  %v563 = vmax.bf16 %v547, 0
  %v564 = vmax.bf16 %v548, 0
  %v565 = vmax.bf16 %v549, 0
  %v566 = vmax.bf16 %v550, 0
  %v567 = vmax.bf16 %v551, 0
  %v568 = vmax.bf16 %v552, 0
  %v569 = vmax.bf16 %v553, 0
  %v570 = vmax.bf16 %v554, 0
  %v571 = vmax.bf16 %v555, 0
  %v572 = vmax.bf16 %v556, 0
  %v573 = vmax.bf16 %v557, 0
  %v574 = vld [vmem:[%s2] sm:$0xf]
  %v575 = vld [vmem:[%s2 + $0x4] sm:$0xf]
  %v576 = vld [vmem:[%s2 + $0x8] sm:$0xf]
  %v577 = vld [vmem:[%s2 + $0xc] sm:$0xf]
  %v578 = vld [vmem:[%s2 + $0x10] sm:$0xf]
  %v579 = vld [vmem:[%s2 + $0x14] sm:$0xf]
  %v580 = vld [vmem:[%s2 + $0x18] sm:$0xf]
  %v581 = vld [vmem:[%s2 + $0x1c] sm:$0xf]
  %v590 = vunpack.c.l.b16 %v574
  %v591 = vunpack.c.l.b16 %v575
  %v592 = vunpack.c.l.b16 %v576
  %v593 = vunpack.c.l.b16 %v577
  %v594 = vunpack.c.l.b16 %v578
  %v595 = vunpack.c.l.b16 %v579
  %v596 = vunpack.c.l.b16 %v580
  %v597 = vunpack.c.l.b16 %v581
  %v598 = vpack.c.b16 %v591, %v590
  %v599 = vpack.c.b16 %v593, %v592
  %v600 = vpack.c.b16 %v595, %v594
  %v601 = vpack.c.b16 %v597, %v596
  %606 = vmatprep.subr.bf16.mxu0 %v559
  %607 = vmatpush1.bf16.msra.mxu0 %v558
  %608 = vmatprep.subr.bf16.mxu0 %v561
  %609 = vmatpush1.bf16.msra.mxu0 %v560
  %610 = vmatprep.subr.bf16.mxu0 %v563
  %611 = vmatpush1.bf16.msra.mxu0 %v562
  %612 = vmatprep.subr.bf16.mxu0 %v565
  %613 = vmatpush1.bf16.msra.mxu0 %v564
  %614 = vmatprep.subr.bf16.mxu0 %v567
  %615 = vmatpush1.bf16.msra.mxu0 %v566
  %616 = vmatprep.subr.bf16.mxu0 %v569
  %617 = vmatpush1.bf16.msra.mxu0 %v568
  %618 = vmatprep.subr.bf16.mxu0 %v571
  %619 = vmatpush1.bf16.msra.mxu0 %v570
  %620 = vmatprep.subr.bf16.mxu0 %v573
  %621 = vmatpush1.bf16.msra.mxu0 %v572
  %622 = vmatprep.subr.bf16.mxu0 0
  %623 = vmatpush1.bf16.msra.mxu0 0
  %624 = vmatprep.subr.bf16.mxu0 0
  %625 = vmatpush1.bf16.msra.mxu0 0
  %626 = vmatprep.subr.bf16.mxu0 0
  %627 = vmatpush1.bf16.msra.mxu0 0
  %628 = vmatprep.subr.bf16.mxu0 0
  %629 = vmatpush1.bf16.msra.mxu0 0
  %630 = vmatprep.subr.bf16.mxu0 0
  %631 = vmatpush1.bf16.msra.mxu0 0
  %632 = vmatprep.subr.bf16.mxu0 0
  %633 = vmatpush1.bf16.msra.mxu0 0
  %634 = vmatprep.subr.bf16.mxu0 0
  %635 = vmatpush1.bf16.msra.mxu0 0
  %636 = vmatprep.subr.bf16.mxu0 0
  %637 = vmatpush1.bf16.msra.mxu0 0
  %638 = vmatprep.mubr.bf16.mxu0 0
  %639 = vmatmul.mubr.bf16.gmra.mrb[0].mxu0 %v598
  %v640 = vpop.f32.mrb[0].mxu0
  %v641 = vadd.f32 0.0, %v640
  %v642 = vpop.f32.mrb[0].mxu0
  %v643 = vadd.f32 0.0, %v642
  %v644 = vpop.f32.mrb[0].mxu0
  %v645 = vadd.f32 0.0, %v644
  %v646 = vpop.f32.mrb[0].mxu0
  %v647 = vadd.f32 0.0, %v646
  %648 = vmatprep.mubr.bf16.mxu0 0
  %649 = vmatmul.mubr.bf16.gmra.mrb[0].mxu0 %v599
  %v650 = vpop.f32.mrb[0].mxu0
  %v651 = vadd.f32 0.0, %v650
  %v652 = vpop.f32.mrb[0].mxu0
  %v653 = vadd.f32 0.0, %v652
  %v654 = vpop.f32.mrb[0].mxu0
  %v655 = vadd.f32 0.0, %v654
  %v656 = vpop.f32.mrb[0].mxu0
  %v657 = vadd.f32 0.0, %v656
  %658 = vmatprep.mubr.bf16.mxu0 0
  %659 = vmatmul.mubr.bf16.gmra.mrb[0].mxu0 %v600
  %v660 = vpop.f32.mrb[0].mxu0
  %v661 = vadd.f32 0.0, %v660
  %v662 = vpop.f32.mrb[0].mxu0
  %v663 = vadd.f32 0.0, %v662
  %v664 = vpop.f32.mrb[0].mxu0
  %v665 = vadd.f32 0.0, %v664
  %v666 = vpop.f32.mrb[0].mxu0
  %v667 = vadd.f32 0.0, %v666
  %668 = vmatprep.mubr.bf16.mxu0 0
  %669 = vmatmul.mubr.bf16.gmra.mrb[0].mxu0 %v601
  %v670 = vpop.f32.mrb[0].mxu0
  %v671 = vadd.f32 0.0, %v670
  %v672 = vpop.f32.mrb[0].mxu0
  %v673 = vadd.f32 0.0, %v672
  %v674 = vpop.f32.mrb[0].mxu0
  %v675 = vadd.f32 0.0, %v674
  %v676 = vpop.f32.mrb[0].mxu0
  %v677 = vadd.f32 0.0, %v676
  %678 = vdwg.mxu0
  %v679 = vpack.c.bf16 %v645, %v641
  %v680 = vpack.c.bf16 %v647, %v643
  %v681 = vpack.c.bf16 %v655, %v651
  %v682 = vpack.c.bf16 %v657, %v653
  %v683 = vpack.c.bf16 %v665, %v661
  %v684 = vpack.c.bf16 %v667, %v663
  %v685 = vpack.c.bf16 %v675, %v671
  %v686 = vpack.c.bf16 %v677, %v673
  %v687 = vpack.c.bf16 %v464, %v463
  %v688 = vpack.c.bf16 %v466, %v465
  %v689 = vpack.c.bf16 %v468, %v467
  %v690 = vpack.c.bf16 %v470, %v469
  %692 = vset.pattern.permute.xlu0 0
  %693 = vperm.xlu0 %692, %v687
  %v694 = vpop.permute.xlu0 %693
  %697 = vset.pattern.permute.xlu0 0
  %698 = vperm.xlu0 %697, %v688
  %v699 = vpop.permute.xlu0 %698
  %702 = vset.pattern.permute.xlu0 0
  %703 = vperm.xlu0 %702, %v689
  %v704 = vpop.permute.xlu0 %703
  %707 = vset.pattern.permute.xlu0 0
  %708 = vperm.xlu0 %707, %v690
  %v709 = vpop.permute.xlu0 %708
  %v711 = vadd.bf16 %v679, %v694
  %v712 = vadd.bf16 %v680, %v694
  %v713 = vadd.bf16 %v681, %v699
  %v714 = vadd.bf16 %v682, %v699
  %v715 = vadd.bf16 %v683, %v704
  %v716 = vadd.bf16 %v684, %v704
  %v717 = vadd.bf16 %v685, %v709
  %v718 = vadd.bf16 %v686, %v709
  %v719 = vmax.bf16 %v711, 0
  %v720 = vmax.bf16 %v712, 0
  %v721 = vmax.bf16 %v713, 0
  %v722 = vmax.bf16 %v714, 0
  %v723 = vmax.bf16 %v715, 0
  %v724 = vmax.bf16 %v716, 0
  %v725 = vmax.bf16 %v717, 0
  %v726 = vmax.bf16 %v718, 0
  %v727 = vld [vmem:[%s2 + $0x20] sm:$0xf]
  %v728 = vld [vmem:[%s2 + $0x24] sm:$0xf]
  %v729 = vld [vmem:[%s2 + $0x28] sm:$0xf]
  %v730 = vld [vmem:[%s2 + $0x2c] sm:$0xf]
  %v735 = vunpack.c.l.b16 %v727
  %v736 = vunpack.c.l.b16 %v728
  %v737 = vunpack.c.l.b16 %v729
  %v738 = vunpack.c.l.b16 %v730
  %v739 = vpack.c.b16 %v736, %v735
  %v740 = vpack.c.b16 %v738, %v737
  %vm741 = vcmask 523264
  %v743 = vsel %vm741, %v739, 0
  %v746 = vsel %vm741, %v740, 0
  %748 = vmatprep.subr.bf16.mxu0 %v720
  %749 = vmatpush1.bf16.msra.mxu0 %v719
  %750 = vmatprep.subr.bf16.mxu0 %v722
  %751 = vmatpush1.bf16.msra.mxu0 %v721
  %752 = vmatprep.subr.bf16.mxu0 %v724
  %753 = vmatpush1.bf16.msra.mxu0 %v723
  %754 = vmatprep.subr.bf16.mxu0 %v726
  %755 = vmatpush1.bf16.msra.mxu0 %v725
  %756 = vmatprep.subr.bf16.mxu0 0
  %757 = vmatpush1.bf16.msra.mxu0 0
  %758 = vmatprep.subr.bf16.mxu0 0
  %759 = vmatpush1.bf16.msra.mxu0 0
  %760 = vmatprep.subr.bf16.mxu0 0
  %761 = vmatpush1.bf16.msra.mxu0 0
  %762 = vmatprep.subr.bf16.mxu0 0
  %763 = vmatpush1.bf16.msra.mxu0 0
  %764 = vmatprep.subr.bf16.mxu0 0
  %765 = vmatpush1.bf16.msra.mxu0 0
  %766 = vmatprep.subr.bf16.mxu0 0
  %767 = vmatpush1.bf16.msra.mxu0 0
  %768 = vmatprep.subr.bf16.mxu0 0
  %769 = vmatpush1.bf16.msra.mxu0 0
  %770 = vmatprep.subr.bf16.mxu0 0
  %771 = vmatpush1.bf16.msra.mxu0 0
  %772 = vmatprep.subr.bf16.mxu0 0
  %773 = vmatpush1.bf16.msra.mxu0 0
  %774 = vmatprep.subr.bf16.mxu0 0
  %775 = vmatpush1.bf16.msra.mxu0 0
  %776 = vmatprep.subr.bf16.mxu0 0
  %777 = vmatpush1.bf16.msra.mxu0 0
  %778 = vmatprep.subr.bf16.mxu0 0
  %779 = vmatpush1.bf16.msra.mxu0 0
  %780 = vmatprep.mubr.bf16.mxu0 0
  %781 = vmatmul.mubr.bf16.gmra.mrb[0].mxu0 %v743
  %v782 = vpop.f32.mrb[0].mxu0
  %v783 = vadd.f32 0.0, %v782
  %v784 = vpop.f32.mrb[0].mxu0
  %v785 = vadd.f32 0.0, %v784
  %v786 = vpop.f32.mrb[0].mxu0
  %v787 = vadd.f32 0.0, %v786
  %v788 = vpop.f32.mrb[0].mxu0
  %v789 = vadd.f32 0.0, %v788
  %790 = vmatprep.mubr.bf16.mxu0 0
  %791 = vmatmul.mubr.bf16.gmra.mrb[0].mxu0 %v746
  %v792 = vpop.f32.mrb[0].mxu0
  %v793 = vadd.f32 0.0, %v792
  %v794 = vpop.f32.mrb[0].mxu0
  %v795 = vadd.f32 0.0, %v794
  %v796 = vpop.f32.mrb[0].mxu0
  %v797 = vadd.f32 0.0, %v796
  %v798 = vpop.f32.mrb[0].mxu0
  %v799 = vadd.f32 0.0, %v798
  %800 = vdwg.mxu0
  %v801 = vpack.c.bf16 %v787, %v783
  %v802 = vpack.c.bf16 %v789, %v785
  %v803 = vpack.c.bf16 %v797, %v793
  %v804 = vpack.c.bf16 %v799, %v795
  %v805 = vpack.c.bf16 %v472, %v471
  %v806 = vpack.c.bf16 %v474, %v473
  %808 = vset.pattern.permute.xlu0 0
  %809 = vperm.xlu0 %808, %v805
  %v810 = vpop.permute.xlu0 %809
  %813 = vset.pattern.permute.xlu0 0
  %814 = vperm.xlu0 %813, %v806
  %v815 = vpop.permute.xlu0 %814
  %v817 = vadd.bf16 %v801, %v810
  %v818 = vadd.bf16 %v802, %v810
  %v819 = vadd.bf16 %v803, %v815
  %v820 = vadd.bf16 %v804, %v815
  %v821 = vmax.bf16 %v817, 0
  %v822 = vmax.bf16 %v818, 0
  %v823 = vmax.bf16 %v819, 0
  %v824 = vmax.bf16 %v820, 0
  %v825 = vld [vmem:[%s2 + $0x30] sm:$0xf]
  %vm826 = vcmask 261120
  %v828 = vsel %vm826, %v825, 0
  %830 = vmatprep.subr.bf16.mxu0 %v822
  %831 = vmatpush1.bf16.msra.mxu0 %v821
  %832 = vmatprep.subr.bf16.mxu0 %v824
  %833 = vmatpush1.bf16.msra.mxu0 %v823
  %834 = vmatprep.subr.bf16.mxu0 0
  %835 = vmatpush1.bf16.msra.mxu0 0
  %836 = vmatprep.subr.bf16.mxu0 0
  %837 = vmatpush1.bf16.msra.mxu0 0
  %838 = vmatprep.subr.bf16.mxu0 0
  %839 = vmatpush1.bf16.msra.mxu0 0
  %840 = vmatprep.subr.bf16.mxu0 0
  %841 = vmatpush1.bf16.msra.mxu0 0
  %842 = vmatprep.subr.bf16.mxu0 0
  %843 = vmatpush1.bf16.msra.mxu0 0
  %844 = vmatprep.subr.bf16.mxu0 0
  %845 = vmatpush1.bf16.msra.mxu0 0
  %846 = vmatprep.subr.bf16.mxu0 0
  %847 = vmatpush1.bf16.msra.mxu0 0
  %848 = vmatprep.subr.bf16.mxu0 0
  %849 = vmatpush1.bf16.msra.mxu0 0
  %850 = vmatprep.subr.bf16.mxu0 0
  %851 = vmatpush1.bf16.msra.mxu0 0
  %852 = vmatprep.subr.bf16.mxu0 0
  %853 = vmatpush1.bf16.msra.mxu0 0
  %854 = vmatprep.subr.bf16.mxu0 0
  %855 = vmatpush1.bf16.msra.mxu0 0
  %856 = vmatprep.subr.bf16.mxu0 0
  %857 = vmatpush1.bf16.msra.mxu0 0
  %858 = vmatprep.subr.bf16.mxu0 0
  %859 = vmatpush1.bf16.msra.mxu0 0
  %860 = vmatprep.subr.bf16.mxu0 0
  %861 = vmatpush1.bf16.msra.mxu0 0
  %862 = vmatprep.mubr.bf16.mxu0 0
  %863 = vmatmul.mubr.bf16.gmra.mrb[0].mxu0 %v828
  %v864 = vpop.f32.mrb[0].mxu0
  %v865 = vadd.f32 0.0, %v864
  %v866 = vpop.f32.mrb[0].mxu0
  %v867 = vadd.f32 0.0, %v866
  %v868 = vpop.f32.mrb[0].mxu0
  %v869 = vpop.f32.mrb[0].mxu0
  %870 = vdwg.mxu0
  %v871 = vpack.c.bf16 %v865, %v865
  %v872 = vpack.c.bf16 %v867, %v867
  %v873 = vpack.c.bf16 %v475, %v475
  %875 = vset.pattern.permute.xlu0 0
  %876 = vperm.xlu0 %875, %v873
  %v877 = vpop.permute.xlu0 %876
  %v879 = vadd.bf16 %v871, %v877
  %v880 = vadd.bf16 %v872, %v877
  %v881 = vmax.bf16 %v879, 0
  %v882 = vmax.bf16 %v880, 0
  %v883 = vunpack.c.l.bf16 %v881
  %v884 = vunpack.c.l.bf16 %v882
  %886 = vset.pattern.permute.xlu0 0
  %887 = vperm.xlu0 %886, %v476
  %v888 = vpop.permute.xlu0 %887
  %v890 = vmul.f32 %v883, %v888
  %v891 = vmul.f32 %v884, %v888
  %v892 = vrot.slane %v890, 4
  %v893 = vadd.f32 %v890, %v892
  %v894 = vrot.slane %v893, 2
  %v895 = vadd.f32 %v893, %v894
  %v896 = vrot.slane %v895, 1
  %v897 = vadd.f32 %v895, %v896
  %v898 = vrot.slane %v891, 4
  %v899 = vadd.f32 %v891, %v898
  %v900 = vrot.slane %v899, 2
  %v901 = vadd.f32 %v899, %v900
  %v902 = vrot.slane %v901, 1
  %v903 = vadd.f32 %v901, %v902
  %905 = vset.pattern.permute.xlu0 0
  %906 = vperm.xlu0 %905, %v477
  %v907 = vpop.permute.xlu0 %906
  %v909 = vadd.f32 %v897, %v907
  %v910 = vadd.f32 %v903, %v907
  %v911 = vxor.u32 %v909, 2147483648
  %v912 = vxor.u32 %v910, 2147483648
  %v913 = vmul.f32 %v911, 1.442695
  %v914 = vpow.pop %v913
  %v915 = vmul.f32 %v912, 1.442695
  %v916 = vpow.pop %v915
  %v917 = vadd.f32 %v914, 1.0
  %v918 = vadd.f32 %v916, 1.0
  %v919 = vrcp.pop %v917
  %v920 = vmul.f32 1.0, %v919
  %v921 = vrcp.pop %v918
  %v922 = vmul.f32 1.0, %v921
  %v925 = vcombine.low %v920, %v922
  %v927 = vunpack.c.l.s4 1966171168
  %v928 = vunpack.c.0.s8 %v927
  %v929 = vlaneseq
  %v930 = vshrl.u32 %v929, 7
  %v931 = vsub.s32 %v928, %v930
  %v932 = vrot.slane %v925, %v931
  %v934 = vunpack.c.l.s4 1966171168
  %v935 = vunpack.c.0.s8 %v934
  %v936 = vlaneseq
  %v937 = vshrl.u32 %v936, 7
  %v938 = vsub.s32 %v935, %v937
  %v939 = vrot.slane %v932, %v938
  %v941 = vlaneseq
  %vm942 = vcmp.ge.s32.totalorder %v941, 0
  %vm943 = vcmp.lt.s32.totalorder %v941, 256
  %vm944 = vmand %vm942, %vm943
  %945 = vst.msk [vmem:[%s4] sm:$0x3] %vm944, %v939
  // Predicated region
  $region18: #{_lambda_.1} parent=0 // pred_check
    _
  $region19: #{_lambda_.1} parent=0 // pred_check_branch
    %947 = sbr.rel (0) target = $region21
  $region20: #{_lambda_.1} parent=0 // pred_region
    _
  $region21: #{_lambda_.1} parent=0 // pred_fallthru
    _
  // Predicated region
  $region22: #{_lambda_.1} parent=0 // pred_check
    _
  $region23: #{_lambda_.1} parent=0 // pred_check_branch
    %949 = sbr.rel (0) target = $region25
  $region24: #{_lambda_.1} parent=0 // pred_region
    _
  $region25: #{_lambda_.1} parent=0 // pred_fallthru
    _

</llo_original>
